<compile_context>
chip_gen: v7x
topology: tpu7x:2x2x1
jax: 0.10.0
libtpu: 0.0.40
codegen_flags: <defaults>
</compile_context>

<pallas_src>
import functools

import jax
import jax.numpy as jnp
from jax.experimental import pallas as pl
from jax.experimental.pallas import tpu as pltpu


def _round_up(x: int, m: int) -> int:
    return (x + m - 1) // m * m


def _pad2(a, rows, cols):
    r, c = a.shape
    return jnp.pad(a, ((0, rows - r), (0, cols - c)))


def _encoder_kernel(x_ref,
                    w1_ref, b1_ref,
                    w2_ref, b2_ref,
                    w3_ref, b3_ref,
                    w4_ref, b4_ref,
                    mu_ref, lv_ref,
                    *, latent_dim, lat_pad):
    """One (TB, *) batch tile of the MLP.

    Matmuls run on the MXU with f32 accumulation; bias add + tanh stay f32, then
    cast back to the compute dtype (taken from the packed weights). The fused
    final matmul produces [mu_pad | logvar_pad]; the split lands on the 128-lane
    boundary at column `lat_pad`, and only the true `latent_dim` columns are
    written to HBM.
    """
    cdt = w1_ref.dtype

    x = x_ref[...].astype(cdt)
    h = jnp.tanh(jnp.dot(x, w1_ref[...], preferred_element_type=jnp.float32)
                 + b1_ref[...]).astype(cdt)
    h = jnp.tanh(jnp.dot(h, w2_ref[...], preferred_element_type=jnp.float32)
                 + b2_ref[...]).astype(cdt)
    h = jnp.tanh(jnp.dot(h, w3_ref[...], preferred_element_type=jnp.float32)
                 + b3_ref[...]).astype(cdt)

    y = jnp.dot(h, w4_ref[...], preferred_element_type=jnp.float32) + b4_ref[...]
    mu_ref[...] = y[:, :latent_dim].astype(mu_ref.dtype)
    lv_ref[...] = y[:, lat_pad:lat_pad + latent_dim].astype(lv_ref.dtype)


def pack_params(params, latent_dim, compute_dtype=jnp.bfloat16):
    """One-time weight packing: cast to the compute dtype and zero-pad feature
    dims to multiples of 128. The final layer is fused, with each half (mu /
    logvar) padded to `lat_pad` lanes so the in-kernel split is lane-aligned.
    Padded weight rows/cols and bias entries are exactly zero, so padded
    activation lanes are tanh(0)=0 and contribute nothing (math unchanged).

    Accepts biases as either (out,) or (1, out).
    """
    w1, b1, w2, b2, w3, b3, w4, b4 = [jnp.asarray(p) for p in params]

    def as_row(b):
        return b.reshape(1, -1)

    input_dim, hidden_dim = w1.shape
    assert w4.shape[1] == 2 * latent_dim
    h_pad = _round_up(hidden_dim, 128)
    lat_pad = _round_up(latent_dim, 128)
    cdt = compute_dtype

    # K of layer 1 stays at input_dim (x is passed unpadded; Mosaic pads K
    # internally at no HBM cost).
    w1_p = _pad2(w1.astype(cdt), input_dim, h_pad)
    w2_p = _pad2(w2.astype(cdt), h_pad, h_pad)
    w3_p = _pad2(w3.astype(cdt), h_pad, h_pad)
    b1_p = _pad2(as_row(b1).astype(jnp.float32), 1, h_pad)
    b2_p = _pad2(as_row(b2).astype(jnp.float32), 1, h_pad)
    b3_p = _pad2(as_row(b3).astype(jnp.float32), 1, h_pad)

    # Fused final layer: [mu-half | logvar-half], each half padded to lat_pad.
    w4c = w4.astype(cdt)
    b4r = as_row(b4).astype(jnp.float32)
    w4_p = jnp.concatenate([_pad2(w4c[:, :latent_dim], h_pad, lat_pad),
                            _pad2(w4c[:, latent_dim:], h_pad, lat_pad)], axis=1)
    b4_p = jnp.concatenate([_pad2(b4r[:, :latent_dim], 1, lat_pad),
                            _pad2(b4r[:, latent_dim:], 1, lat_pad)], axis=1)

    return (w1_p, b1_p, w2_p, b2_p, w3_p, b3_p, w4_p, b4_p)


@functools.partial(jax.jit, static_argnames=("latent_dim", "block_b"))
def encoder_forward(x, packed_params, latent_dim, block_b=512):
    """Pallas encoder forward. `packed_params` comes from `pack_params`.
    Returns (mu, logvar) with shape (B, latent_dim), dtype float32."""
    w1_p, b1_p, w2_p, b2_p, w3_p, b3_p, w4_p, b4_p = packed_params

    B, input_dim = x.shape
    assert w1_p.shape[0] == input_dim
    h_pad = w1_p.shape[1]
    lat_pad = w4_p.shape[1] // 2

    # Batch tile: multiple of 16 (bf16 sublane packing); capped at ceil(B/2) so
    # the grid has >= 2 steps and can shard across v7x's two TensorCores.
    if B <= 16:
        TB = B                      # single full-dim block
    else:
        TB = max(16, min(block_b, _round_up(pl.cdiv(B, 2), 16)))
    grid = (pl.cdiv(B, TB),)

    kernel = functools.partial(_encoder_kernel,
                               latent_dim=latent_dim, lat_pad=lat_pad)

    # BlockSpecs: x / outputs move with the batch grid; params stay resident.
    x_spec = pl.BlockSpec((TB, input_dim), lambda i: (i, 0))
    out_spec = pl.BlockSpec((TB, latent_dim), lambda i: (i, 0))
    const_spec = lambda a: pl.BlockSpec(a.shape, lambda i: (0, 0))

    # Cost hint for the XLA scheduler.
    flops = 2 * B * (input_dim * h_pad + 2 * h_pad * h_pad + h_pad * 2 * lat_pad)
    bytes_accessed = (
        B * input_dim * x.dtype.itemsize
        + sum(int(a.size) * a.dtype.itemsize
              for a in (w1_p, b1_p, w2_p, b2_p, w3_p, b3_p, w4_p, b4_p))
        + 2 * B * latent_dim * 4)
    cost = pl.CostEstimate(flops=flops,
                           transcendentals=3 * B * h_pad,
                           bytes_accessed=bytes_accessed)

    # VMEM estimate (constants counted double-buffered to be conservative).
    cdt_size = jnp.dtype(w1_p.dtype).itemsize
    weight_bytes = (input_dim * h_pad + 2 * h_pad * h_pad + h_pad * 2 * lat_pad) * cdt_size
    bias_bytes = (3 * h_pad + 2 * lat_pad) * 4
    tile_bytes = (2 * TB * input_dim * x.dtype.itemsize      # x, double-buffered
                  + 2 * 2 * TB * latent_dim * 4              # mu/logvar, double-buffered
                  + TB * (6 * h_pad + 8 * lat_pad))          # in-kernel intermediates
    vmem_est = 2 * weight_bytes + 2 * bias_bytes + tile_bytes

    cp_kwargs = dict(dimension_semantics=("parallel",))
    if vmem_est > 16 * 1024 * 1024:          # only override when the default is tight
        cp_kwargs["vmem_limit_bytes"] = int(min(vmem_est * 3 // 2, 64 * 1024 * 1024))

    mu, logvar = pl.pallas_call(
        kernel,
        grid=grid,
        out_shape=(jax.ShapeDtypeStruct((B, latent_dim), jnp.float32),
                   jax.ShapeDtypeStruct((B, latent_dim), jnp.float32)),
        in_specs=[
            x_spec,
            const_spec(w1_p), const_spec(b1_p),
            const_spec(w2_p), const_spec(b2_p),
            const_spec(w3_p), const_spec(b3_p),
            const_spec(w4_p), const_spec(b4_p),
        ],
        out_specs=[out_spec, out_spec],
        compiler_params=pltpu.CompilerParams(**cp_kwargs),
        cost_estimate=cost,
    )(x, w1_p, b1_p, w2_p, b2_p, w3_p, b3_p, w4_p, b4_p)

    return mu, logvar


def init_params(key, input_dim, hidden_dim, latent_dim):
    """Deterministic init mimicking torch.nn.Linear (uniform +/- 1/sqrt(fan_in)).
    Weights stored [in_dim, out_dim] so y = x @ W + b (same math as PyTorch's
    x @ W.T with its [out, in] convention). Biases are 1-D (out,) like PyTorch."""
    out_dim = 2 * latent_dim
    dims = [(input_dim, hidden_dim),
            (hidden_dim, hidden_dim),
            (hidden_dim, hidden_dim),
            (hidden_dim, out_dim)]
    params = []
    for (fan_in, fan_out) in dims:
        key, kw, kb = jax.random.split(key, 3)
        bound = 1.0 / jnp.sqrt(fan_in)
        w = jax.random.uniform(kw, (fan_in, fan_out), jnp.float32, -bound, bound)
        b = jax.random.uniform(kb, (fan_out,), jnp.float32, -bound, bound)
        params.extend([w, b])
    return tuple(params)


def _reference_forward(x, params, latent_dim, compute_dtype):
    """Plain-JAX reference (unpadded): compute-dtype matmul operands, f32
    accumulation, f32 bias + tanh — same dtype policy as the kernel."""
    w1, b1, w2, b2, w3, b3, w4, b4 = params
    cdt = compute_dtype

    def lin(h, w, b):
        return jnp.dot(h.astype(cdt), w.astype(cdt),
                       preferred_element_type=jnp.float32) + b.reshape(1, -1)

    h = jnp.tanh(lin(x, w1, b1))
    h = jnp.tanh(lin(h, w2, b2))
    h = jnp.tanh(lin(h, w3, b3))
    y = lin(h, w4, b4)
    return y[:, :latent_dim], y[:, latent_dim:]


if __name__ == "__main__":
    # Small shapes consistent with the module's forward: x is [batch, input_dim].
    batch = 8
    input_dim = 32
    hidden_dim = 32
    latent_dim = 8

    key = jax.random.PRNGKey(0)
    k_x, k_p = jax.random.split(key)
    x = jax.random.normal(k_x, (batch, input_dim), dtype=jnp.float32)
    params = init_params(k_p, input_dim, hidden_dim, latent_dim)

    # One-time packing (outside the hot path); bf16 MXU operands on all TPU gens.
    packed = pack_params(params, latent_dim, compute_dtype=jnp.bfloat16)

    mu, logvar = encoder_forward(x, packed, latent_dim)
    jax.block_until_ready((mu, logvar))

    assert mu.shape == (batch, latent_dim)
    assert logvar.shape == (batch, latent_dim)

    # Check against a matched-dtype JAX reference (tight) and an f32 reference
    # (loose; bounds the bf16 quantization error vs the original f32 module).
    mu_ref, lv_ref = _reference_forward(x, params, latent_dim, jnp.bfloat16)
    assert jnp.allclose(mu, mu_ref, atol=5e-3, rtol=5e-3)
    assert jnp.allclose(logvar, lv_ref, atol=5e-3, rtol=5e-3)

    mu_f32, lv_f32 = _reference_forward(x, params, latent_dim, jnp.float32)
    assert jnp.allclose(mu, mu_f32, atol=3e-2, rtol=3e-2)
    assert jnp.allclose(logvar, lv_f32, atol=3e-2, rtol=3e-2)

    print("KERNEL_OK")
</pallas_src>

<mosaic_0001>
module attributes {stable_mosaic.version = 11 : i64} {
  func.func @_encoder_kernel(%arg0: i32, %arg1: memref<8x32xf32, #tpu.memory_space<vmem>>, %arg2: memref<32x128xbf16, #tpu.memory_space<vmem>>, %arg3: memref<1x128xf32, #tpu.memory_space<vmem>>, %arg4: memref<128x128xbf16, #tpu.memory_space<vmem>>, %arg5: memref<1x128xf32, #tpu.memory_space<vmem>>, %arg6: memref<128x128xbf16, #tpu.memory_space<vmem>>, %arg7: memref<1x128xf32, #tpu.memory_space<vmem>>, %arg8: memref<128x256xbf16, #tpu.memory_space<vmem>>, %arg9: memref<1x256xf32, #tpu.memory_space<vmem>>, %arg10: memref<8x8xf32, #tpu.memory_space<vmem>>, %arg11: memref<8x8xf32, #tpu.memory_space<vmem>>) attributes {dimension_semantics = [#tpu.dimension_semantics<parallel>], iteration_bounds = array<i64: 1>, scalar_prefetch = 0 : i64, scratch_operands = 0 : i64, tpu.core_type = #tpu.core_type<tc>, window_params = [{transform_indices = @transform_0, window_bounds = array<i64: 8, 32>}, {pipeline_mode = #tpu.pipeline_mode<synchronous>, transform_indices = @transform_1, window_bounds = array<i64: 32, 128>}, {pipeline_mode = #tpu.pipeline_mode<synchronous>, transform_indices = @transform_2, window_bounds = array<i64: 1, 128>}, {pipeline_mode = #tpu.pipeline_mode<synchronous>, transform_indices = @transform_3, window_bounds = array<i64: 128, 128>}, {pipeline_mode = #tpu.pipeline_mode<synchronous>, transform_indices = @transform_4, window_bounds = array<i64: 1, 128>}, {pipeline_mode = #tpu.pipeline_mode<synchronous>, transform_indices = @transform_5, window_bounds = array<i64: 128, 128>}, {pipeline_mode = #tpu.pipeline_mode<synchronous>, transform_indices = @transform_6, window_bounds = array<i64: 1, 128>}, {pipeline_mode = #tpu.pipeline_mode<synchronous>, transform_indices = @transform_7, window_bounds = array<i64: 128, 256>}, {pipeline_mode = #tpu.pipeline_mode<synchronous>, transform_indices = @transform_8, window_bounds = array<i64: 1, 256>}, {transform_indices = @transform_9, window_bounds = array<i64: 8, 8>}, {transform_indices = @transform_10, window_bounds = array<i64: 8, 8>}]} {
    %c0 = arith.constant 0 : index
    %c0_0 = arith.constant 0 : index
    %0 = vector.load %arg1[%c0, %c0_0] : memref<8x32xf32, #tpu.memory_space<vmem>>, vector<8x32xf32>
    %1 = arith.truncf %0 : vector<8x32xf32> to vector<8x32xbf16>
    %c0_1 = arith.constant 0 : index
    %c0_2 = arith.constant 0 : index
    %2 = vector.load %arg2[%c0_1, %c0_2] : memref<32x128xbf16, #tpu.memory_space<vmem>>, vector<32x128xbf16>
    %cst = arith.constant dense<0.000000e+00> : vector<8x128xf32>
    %3 = tpu.matmul %1, %2, %cst {dimension_numbers = #tpu.dot_dimension_numbers<[1], [0], [0], [1], [0, 0, 1, 1], [], []>} : vector<8x32xbf16>, vector<32x128xbf16>, vector<8x128xf32> -> vector<8x128xf32>
    %c0_3 = arith.constant 0 : index
    %c0_4 = arith.constant 0 : index
    %4 = vector.load %arg3[%c0_3, %c0_4] : memref<1x128xf32, #tpu.memory_space<vmem>>, vector<1x128xf32>
    %5 = vector.broadcast %4 : vector<1x128xf32> to vector<8x128xf32>
    %6 = arith.addf %3, %5 : vector<8x128xf32>
    %7 = math.tanh %6 : vector<8x128xf32>
    %8 = arith.truncf %7 : vector<8x128xf32> to vector<8x128xbf16>
    %c0_5 = arith.constant 0 : index
    %c0_6 = arith.constant 0 : index
    %9 = vector.load %arg4[%c0_5, %c0_6] : memref<128x128xbf16, #tpu.memory_space<vmem>>, vector<128x128xbf16>
    %cst_7 = arith.constant dense<0.000000e+00> : vector<8x128xf32>
    %10 = tpu.matmul %8, %9, %cst_7 {dimension_numbers = #tpu.dot_dimension_numbers<[1], [0], [0], [1], [0, 0, 1, 1], [], []>} : vector<8x128xbf16>, vector<128x128xbf16>, vector<8x128xf32> -> vector<8x128xf32>
    %c0_8 = arith.constant 0 : index
    %c0_9 = arith.constant 0 : index
    %11 = vector.load %arg5[%c0_8, %c0_9] : memref<1x128xf32, #tpu.memory_space<vmem>>, vector<1x128xf32>
    %12 = vector.broadcast %11 : vector<1x128xf32> to vector<8x128xf32>
    %13 = arith.addf %10, %12 : vector<8x128xf32>
    %14 = math.tanh %13 : vector<8x128xf32>
    %15 = arith.truncf %14 : vector<8x128xf32> to vector<8x128xbf16>
    %c0_10 = arith.constant 0 : index
    %c0_11 = arith.constant 0 : index
    %16 = vector.load %arg6[%c0_10, %c0_11] : memref<128x128xbf16, #tpu.memory_space<vmem>>, vector<128x128xbf16>
    %cst_12 = arith.constant dense<0.000000e+00> : vector<8x128xf32>
    %17 = tpu.matmul %15, %16, %cst_12 {dimension_numbers = #tpu.dot_dimension_numbers<[1], [0], [0], [1], [0, 0, 1, 1], [], []>} : vector<8x128xbf16>, vector<128x128xbf16>, vector<8x128xf32> -> vector<8x128xf32>
    %c0_13 = arith.constant 0 : index
    %c0_14 = arith.constant 0 : index
    %18 = vector.load %arg7[%c0_13, %c0_14] : memref<1x128xf32, #tpu.memory_space<vmem>>, vector<1x128xf32>
    %19 = vector.broadcast %18 : vector<1x128xf32> to vector<8x128xf32>
    %20 = arith.addf %17, %19 : vector<8x128xf32>
    %21 = math.tanh %20 : vector<8x128xf32>
    %22 = arith.truncf %21 : vector<8x128xf32> to vector<8x128xbf16>
    %c0_15 = arith.constant 0 : index
    %c0_16 = arith.constant 0 : index
    %23 = vector.load %arg8[%c0_15, %c0_16] : memref<128x256xbf16, #tpu.memory_space<vmem>>, vector<128x256xbf16>
    %cst_17 = arith.constant dense<0.000000e+00> : vector<8x256xf32>
    %24 = tpu.matmul %22, %23, %cst_17 {dimension_numbers = #tpu.dot_dimension_numbers<[1], [0], [0], [1], [0, 0, 1, 1], [], []>} : vector<8x128xbf16>, vector<128x256xbf16>, vector<8x256xf32> -> vector<8x256xf32>
    %c0_18 = arith.constant 0 : index
    %c0_19 = arith.constant 0 : index
    %25 = vector.load %arg9[%c0_18, %c0_19] : memref<1x256xf32, #tpu.memory_space<vmem>>, vector<1x256xf32>
    %26 = vector.broadcast %25 : vector<1x256xf32> to vector<8x256xf32>
    %27 = arith.addf %24, %26 : vector<8x256xf32>
    %28 = vector.extract_strided_slice %27 {offsets = [0, 0], sizes = [8, 8], strides = [1, 1]} : vector<8x256xf32> to vector<8x8xf32>
    %c0_20 = arith.constant 0 : index
    %c0_21 = arith.constant 0 : index
    %29 = vector.load %arg10[%c0_20, %c0_21] : memref<8x8xf32, #tpu.memory_space<vmem>>, vector<8x8xf32>
    tpu.vector_store %arg10[%c0_20, %c0_21], %28 {strides = array<i32>} : memref<8x8xf32, #tpu.memory_space<vmem>>, vector<8x8xf32>,
    %30 = vector.extract_strided_slice %27 {offsets = [0, 128], sizes = [8, 8], strides = [1, 1]} : vector<8x256xf32> to vector<8x8xf32>
    %c0_22 = arith.constant 0 : index
    %c0_23 = arith.constant 0 : index
    %31 = vector.load %arg11[%c0_22, %c0_23] : memref<8x8xf32, #tpu.memory_space<vmem>>, vector<8x8xf32>
    tpu.vector_store %arg11[%c0_22, %c0_23], %30 {strides = array<i32>} : memref<8x8xf32, #tpu.memory_space<vmem>>, vector<8x8xf32>,
    return
  }
  func.func @transform_0(%arg0: i32) -> (i32, i32) {
    %c0_i32 = arith.constant 0 : i32
    %c0_i32_0 = arith.constant 0 : i32
    return %arg0, %c0_i32 : i32, i32
  }
  func.func @transform_1(%arg0: i32) -> (i32, i32) {
    %c0_i32 = arith.constant 0 : i32
    %c0_i32_0 = arith.constant 0 : i32
    %c0_i32_1 = arith.constant 0 : i32
    return %c0_i32, %c0_i32_0 : i32, i32
  }
  func.func @transform_2(%arg0: i32) -> (i32, i32) {
    %c0_i32 = arith.constant 0 : i32
    %c0_i32_0 = arith.constant 0 : i32
    %c0_i32_1 = arith.constant 0 : i32
    return %c0_i32, %c0_i32_0 : i32, i32
  }
  func.func @transform_3(%arg0: i32) -> (i32, i32) {
    %c0_i32 = arith.constant 0 : i32
    %c0_i32_0 = arith.constant 0 : i32
    %c0_i32_1 = arith.constant 0 : i32
    return %c0_i32, %c0_i32_0 : i32, i32
  }
  func.func @transform_4(%arg0: i32) -> (i32, i32) {
    %c0_i32 = arith.constant 0 : i32
    %c0_i32_0 = arith.constant 0 : i32
    %c0_i32_1 = arith.constant 0 : i32
    return %c0_i32, %c0_i32_0 : i32, i32
  }
  func.func @transform_5(%arg0: i32) -> (i32, i32) {
    %c0_i32 = arith.constant 0 : i32
    %c0_i32_0 = arith.constant 0 : i32
    %c0_i32_1 = arith.constant 0 : i32
    return %c0_i32, %c0_i32_0 : i32, i32
  }
  func.func @transform_6(%arg0: i32) -> (i32, i32) {
    %c0_i32 = arith.constant 0 : i32
    %c0_i32_0 = arith.constant 0 : i32
    %c0_i32_1 = arith.constant 0 : i32
    return %c0_i32, %c0_i32_0 : i32, i32
  }
  func.func @transform_7(%arg0: i32) -> (i32, i32) {
    %c0_i32 = arith.constant 0 : i32
    %c0_i32_0 = arith.constant 0 : i32
    %c0_i32_1 = arith.constant 0 : i32
    return %c0_i32, %c0_i32_0 : i32, i32
  }
  func.func @transform_8(%arg0: i32) -> (i32, i32) {
    %c0_i32 = arith.constant 0 : i32
    %c0_i32_0 = arith.constant 0 : i32
    %c0_i32_1 = arith.constant 0 : i32
    return %c0_i32, %c0_i32_0 : i32, i32
  }
  func.func @transform_9(%arg0: i32) -> (i32, i32) {
    %c0_i32 = arith.constant 0 : i32
    %c0_i32_0 = arith.constant 0 : i32
    return %arg0, %c0_i32 : i32, i32
  }
  func.func @transform_10(%arg0: i32) -> (i32, i32) {
    %c0_i32 = arith.constant 0 : i32
    %c0_i32_0 = arith.constant 0 : i32
    return %arg0, %c0_i32 : i32, i32
  }
}

</mosaic_0001>

<llo_original>
// kernel: encoder_forward.1
$region0: #{encoder_forward.1}
  #allocation0 [shape = 'u32[]', space=smem, size = 0x4, offset = 0x4, fixed_abs, tag = 'smem constant byte address 0x4 - core index']
  #allocation1 [shape = 'u32[144,128]{1,0:T(1,128)}', space=vmem, size = 0x12000, scoped, tag = 'internal scratch']
  %s0 = inlined_call_operand.hbm [shape: f32[8,32], index: 0, kind: input, shape index: {}]
  %s1 = inlined_call_operand.hbm [shape: bf16[32,128], index: 1, kind: input, shape index: {}]
  %s2 = inlined_call_operand.vmem [shape: f32[1,128], index: 2, kind: input, shape index: {}]
  %s3 = inlined_call_operand.hbm [shape: bf16[128,128], index: 3, kind: input, shape index: {}]
  %s4 = inlined_call_operand.vmem [shape: f32[1,128], index: 4, kind: input, shape index: {}]
  %s5 = inlined_call_operand.hbm [shape: bf16[128,128], index: 5, kind: input, shape index: {}]
  %s6 = inlined_call_operand.vmem [shape: f32[1,128], index: 6, kind: input, shape index: {}]
  %s7 = inlined_call_operand.hbm [shape: bf16[128,256], index: 7, kind: input, shape index: {}]
  %s8 = inlined_call_operand.vmem [shape: f32[1,256], index: 8, kind: input, shape index: {}]
  %s9 = inlined_call_operand.hbm [shape: f32[8,8], index: 9, kind: output, shape index: {0}]
  %s10 = inlined_call_operand.hbm [shape: f32[8,8], index: 10, kind: output, shape index: {1}]
  %11 = xla_tuple %s9, %s10
  %s12 = sld [smem:[#allocation0]]
  $region74: #{encoder_forward.1} parent=0
    _
  %s14 = ssub.s32 1, %s12
  %s15 = scalar_select 0, %s14, %s12
  $region1: #{encoder_forward.1} parent=0
    #allocation2 [shape = 'u8[4096]{0}', space=vmem, size = 0x1000, scoped, tag = 'input window, operand 0, single buffered']
    #allocation3 [shape = 's32[1]{0}', space=sflag, size = 0x4, scoped, tag = 'scoped memory for encoder_forward.1']
    #allocation4 [shape = 's32[1]{0}', space=sflag, size = 0x4, scoped, tag = 'scoped memory for encoder_forward.1']
    #allocation5 [shape = 'u8[8192]{0}', space=vmem, size = 0x2000, scoped, tag = 'input window, operand 1, single buffered']
    #allocation6 [shape = 's32[1]{0}', space=sflag, size = 0x4, scoped, tag = 'scoped memory for encoder_forward.1']
    #allocation7 [shape = 'u8[32768]{0}', space=vmem, size = 0x8000, scoped, tag = 'input window, operand 3, single buffered']
    #allocation8 [shape = 'u8[32768]{0}', space=vmem, size = 0x8000, scoped, tag = 'input window, operand 5, single buffered']
    #allocation9 [shape = 's32[1]{0}', space=sflag, size = 0x4, scoped, tag = 'scoped memory for encoder_forward.1']
    #allocation10 [shape = 'u8[65536]{0}', space=vmem, size = 0x10000, scoped, tag = 'input window, operand 7, single buffered']
    #allocation11 [shape = 'u8[4096]{0}', space=vmem, size = 0x1000, scoped, tag = 'output window, operand 0, single buffered']
    #allocation12 [shape = 'u8[4096]{0}', space=vmem, size = 0x1000, scoped, tag = 'output window, operand 1, single buffered']
    #allocation13 [shape = 's32[1]{0}', space=sflag, size = 0x4, scoped, tag = 'scoped memory for encoder_forward.1']
    %16 = vsyncpa [#allocation3], 0
    %17 = vsyncpa [#allocation6], 0
    %18 = vsyncpa [#allocation9], 0
    %19 = vsyncpa [#allocation4], 0
    %20 = vsyncpa [#allocation13], 0
    // Predicated region
    $region2: #{encoder_forward.1} parent=1 // pred_check
      _
    $region3: #{encoder_forward.1} parent=1 // pred_check_branch
      %22 = sbr.rel (0) target = $region5
    $region4: #{encoder_forward.1} parent=1 // pred_region
      %s24 = ssub.s32 128, 128
      %25 = vsyncadd [#allocation3], %s24
      %s27 = sshll.u32 [#allocation2], 4
      %s28 = int_to_ptr.vmem [resolvable:$true] %s27
      %30 = dma.hbm_to_vmem [thread:$0]  %s0, 128, %s28, [#allocation3]
    $region5: #{encoder_forward.1} parent=1 // pred_fallthru
      _
    // Predicated region
    $region6: #{encoder_forward.1} parent=1 // pred_check
      _
    $region7: #{encoder_forward.1} parent=1 // pred_check_branch
      %32 = sbr.rel (0) target = $region9
    $region8: #{encoder_forward.1} parent=1 // pred_region
      %s34 = ssub.s32 256, 256
      %35 = vsyncadd [#allocation6], %s34
      %s36 = sshll.u32 [#allocation5], 4
      %s37 = int_to_ptr.vmem [resolvable:$true] %s36
      %42 = dma.hbm_to_vmem [thread:$0]  %s1, 256, %s37, [#allocation6], 64, 64, 4
    $region9: #{encoder_forward.1} parent=1 // pred_fallthru
      _
    // Predicated region
    $region10: #{encoder_forward.1} parent=1 // pred_check
      _
    $region11: #{encoder_forward.1} parent=1 // pred_check_branch
      %44 = sbr.rel (0) target = $region13
    $region12: #{encoder_forward.1} parent=1 // pred_region
      _
    $region13: #{encoder_forward.1} parent=1 // pred_fallthru
      _
    // Predicated region
    $region14: #{encoder_forward.1} parent=1 // pred_check
      _
    $region15: #{encoder_forward.1} parent=1 // pred_check_branch
      %46 = sbr.rel (0) target = $region17
    $region16: #{encoder_forward.1} parent=1 // pred_region
      %s48 = ssub.s32 1024, 1024
      %49 = vsyncadd [#allocation6], %s48
      %s50 = sshll.u32 [#allocation7], 4
      %s51 = int_to_ptr.vmem [resolvable:$true] %s50
      %56 = dma.hbm_to_vmem [thread:$0]  %s3, 1024, %s51, [#allocation6], 64, 64, 4
    $region17: #{encoder_forward.1} parent=1 // pred_fallthru
      _
    // Predicated region
    $region18: #{encoder_forward.1} parent=1 // pred_check
      _
    $region19: #{encoder_forward.1} parent=1 // pred_check_branch
      %58 = sbr.rel (0) target = $region21
    $region20: #{encoder_forward.1} parent=1 // pred_region
      _
    $region21: #{encoder_forward.1} parent=1 // pred_fallthru
      _
    // Predicated region
    $region22: #{encoder_forward.1} parent=1 // pred_check
      _
    $region23: #{encoder_forward.1} parent=1 // pred_check_branch
      %60 = sbr.rel (0) target = $region25
    $region24: #{encoder_forward.1} parent=1 // pred_region
      %s62 = ssub.s32 1024, 1024
      %63 = vsyncadd [#allocation9], %s62
      %s64 = sshll.u32 [#allocation8], 4
      %s65 = int_to_ptr.vmem [resolvable:$true] %s64
      %70 = dma.hbm_to_vmem [thread:$0]  %s5, 1024, %s65, [#allocation9], 64, 64, 4
    $region25: #{encoder_forward.1} parent=1 // pred_fallthru
      _
    // Predicated region
    $region26: #{encoder_forward.1} parent=1 // pred_check
      _
    $region27: #{encoder_forward.1} parent=1 // pred_check_branch
      %72 = sbr.rel (0) target = $region29
    $region28: #{encoder_forward.1} parent=1 // pred_region
      _
    $region29: #{encoder_forward.1} parent=1 // pred_fallthru
      _
    // Predicated region
    $region30: #{encoder_forward.1} parent=1 // pred_check
      _
    $region31: #{encoder_forward.1} parent=1 // pred_check_branch
      %74 = sbr.rel (0) target = $region33
    $region32: #{encoder_forward.1} parent=1 // pred_region
      %s76 = ssub.s32 2048, 2048
      %77 = vsyncadd [#allocation9], %s76
      %s78 = sshll.u32 [#allocation10], 4
      %s79 = int_to_ptr.vmem [resolvable:$true] %s78
      %84 = dma.hbm_to_vmem [thread:$0]  %s7, 2048, %s79, [#allocation9], 128, 128, 8
    $region33: #{encoder_forward.1} parent=1 // pred_fallthru
      _
    // Predicated region
    $region34: #{encoder_forward.1} parent=1 // pred_check
      _
    $region35: #{encoder_forward.1} parent=1 // pred_check_branch
      %86 = sbr.rel (0) target = $region37
    $region36: #{encoder_forward.1} parent=1 // pred_region
      _
    $region37: #{encoder_forward.1} parent=1 // pred_fallthru
      _
    // Predicated region
    $region38: #{encoder_forward.1} parent=1 // pred_check
      _
    $region39: #{encoder_forward.1} parent=1 // pred_check_branch
      %88 = sbr.rel (0) target = $region41
    $region40: #{encoder_forward.1} parent=1 // pred_region
      %89 = dma.done [#allocation3], 128
    $region41: #{encoder_forward.1} parent=1 // pred_fallthru
      _
    // Predicated region
    $region42: #{encoder_forward.1} parent=1 // pred_check
      _
    $region43: #{encoder_forward.1} parent=1 // pred_check_branch
      %91 = sbr.rel (0) target = $region45
    $region44: #{encoder_forward.1} parent=1 // pred_region
      %92 = dma.done [#allocation6], 256
    $region45: #{encoder_forward.1} parent=1 // pred_fallthru
      _
    // Predicated region
    $region46: #{encoder_forward.1} parent=1 // pred_check
      _
    $region47: #{encoder_forward.1} parent=1 // pred_check_branch
      %94 = sbr.rel (0) target = $region49
    $region48: #{encoder_forward.1} parent=1 // pred_region
      %95 = dma.done [#allocation6], 1024
    $region49: #{encoder_forward.1} parent=1 // pred_fallthru
      _
    // Predicated region
    $region50: #{encoder_forward.1} parent=1 // pred_check
      _
    $region51: #{encoder_forward.1} parent=1 // pred_check_branch
      %97 = sbr.rel (0) target = $region53
    $region52: #{encoder_forward.1} parent=1 // pred_region
      %98 = dma.done [#allocation9], 1024
    $region53: #{encoder_forward.1} parent=1 // pred_fallthru
      _
    // Predicated region
    $region54: #{encoder_forward.1} parent=1 // pred_check
      _
    $region55: #{encoder_forward.1} parent=1 // pred_check_branch
      %100 = sbr.rel (0) target = $region57
    $region56: #{encoder_forward.1} parent=1 // pred_region
      %101 = dma.done [#allocation9], 2048
    $region57: #{encoder_forward.1} parent=1 // pred_fallthru
      _
    %v103 = vld [vmem:[#allocation2] sm:$0xff]
    %v104 = vpack.c.bf16 %v103, %v103
    %v105 = vld [vmem:[#allocation5] sm:$0xf]
    %v106 = vld [vmem:[#allocation5 + $0x4] sm:$0xf]
    %v107 = vld [vmem:[#allocation5 + $0x8] sm:$0xf]
    %v108 = vld [vmem:[#allocation5 + $0xc] sm:$0xf]
    %v109 = vld [vmem:[%s2] sm:$0x1]
    %v111 = vlaneseq
    %v112 = vshrl.u32 %v111, 7
    %v113 = vsub.s32 0, %v112
    %v114 = vrot.slane %v109, %v113
    %v120 = vunpack.c.l.b16 %v105
    %v121 = vunpack.c.l.b16 %v106
    %v122 = vunpack.c.l.b16 %v107
    %v123 = vunpack.c.l.b16 %v108
    %v124 = vpack.c.b16 %v121, %v120
    %v125 = vpack.c.b16 %v123, %v122
    %vm128 = vcmask 261120
    %v130 = vsel %vm128, %v104, 0
    %132 = vmatprep.subr.bf16.mxu0 0
    %133 = vmatpush1.bf16.msra.mxu0 %v124
    %134 = vmatprep.subr.bf16.mxu0 0
    %135 = vmatpush1.bf16.msra.mxu0 %v125
    %136 = vmatprep.subr.bf16.mxu0 0
    %137 = vmatpush1.bf16.msra.mxu0 0
    %138 = vmatprep.subr.bf16.mxu0 0
    %139 = vmatpush1.bf16.msra.mxu0 0
    %140 = vmatprep.subr.bf16.mxu0 0
    %141 = vmatpush1.bf16.msra.mxu0 0
    %142 = vmatprep.subr.bf16.mxu0 0
    %143 = vmatpush1.bf16.msra.mxu0 0
    %144 = vmatprep.subr.bf16.mxu0 0
    %145 = vmatpush1.bf16.msra.mxu0 0
    %146 = vmatprep.subr.bf16.mxu0 0
    %147 = vmatpush1.bf16.msra.mxu0 0
    %148 = vmatprep.subr.bf16.mxu0 0
    %149 = vmatpush1.bf16.msra.mxu0 0
    %150 = vmatprep.subr.bf16.mxu0 0
    %151 = vmatpush1.bf16.msra.mxu0 0
    %152 = vmatprep.subr.bf16.mxu0 0
    %153 = vmatpush1.bf16.msra.mxu0 0
    %154 = vmatprep.subr.bf16.mxu0 0
    %155 = vmatpush1.bf16.msra.mxu0 0
    %156 = vmatprep.subr.bf16.mxu0 0
    %157 = vmatpush1.bf16.msra.mxu0 0
    %158 = vmatprep.subr.bf16.mxu0 0
    %159 = vmatpush1.bf16.msra.mxu0 0
    %160 = vmatprep.subr.bf16.mxu0 0
    %161 = vmatpush1.bf16.msra.mxu0 0
    %162 = vmatprep.subr.bf16.mxu0 0
    %163 = vmatpush1.bf16.msra.mxu0 0
    %164 = vmatprep.mubr.bf16.mxu0 0
    %165 = vmatmul.mubr.bf16.gmra.mrb[0].mxu0 %v130
    %v166 = vpop.f32.mrb[0].mxu0
    %v167 = vadd.f32 %v114, %v166
    %v168 = vpop.f32.mrb[0].mxu0
    %v169 = vpop.f32.mrb[0].mxu0
    %v170 = vpop.f32.mrb[0].mxu0
    %171 = vdwg.mxu0
    %v172 = vtanh.pop %v167
    %v173 = vpack.c.bf16 %v172, %v172
    %v174 = vld [vmem:[#allocation7] sm:$0xf]
    %v175 = vld [vmem:[#allocation7 + $0x4] sm:$0xf]
    %v176 = vld [vmem:[#allocation7 + $0x8] sm:$0xf]
    %v177 = vld [vmem:[#allocation7 + $0xc] sm:$0xf]
    %v178 = vld [vmem:[#allocation7 + $0x10] sm:$0xf]
    %v179 = vld [vmem:[#allocation7 + $0x14] sm:$0xf]
    %v180 = vld [vmem:[#allocation7 + $0x18] sm:$0xf]
    %v181 = vld [vmem:[#allocation7 + $0x1c] sm:$0xf]
    %v182 = vld [vmem:[#allocation7 + $0x20] sm:$0xf]
    %v183 = vld [vmem:[#allocation7 + $0x24] sm:$0xf]
    %v184 = vld [vmem:[#allocation7 + $0x28] sm:$0xf]
    %v185 = vld [vmem:[#allocation7 + $0x2c] sm:$0xf]
    %v186 = vld [vmem:[#allocation7 + $0x30] sm:$0xf]
    %v187 = vld [vmem:[#allocation7 + $0x34] sm:$0xf]
    %v188 = vld [vmem:[#allocation7 + $0x38] sm:$0xf]
    %v189 = vld [vmem:[#allocation7 + $0x3c] sm:$0xf]
    %v190 = vld [vmem:[%s4] sm:$0x1]
    %v192 = vlaneseq
    %v193 = vshrl.u32 %v192, 7
    %v194 = vsub.s32 0, %v193
    %v195 = vrot.slane %v190, %v194
    %v213 = vunpack.c.l.b16 %v174
    %v214 = vunpack.c.l.b16 %v175
    %v215 = vunpack.c.l.b16 %v176
    %v216 = vunpack.c.l.b16 %v177
    %v217 = vunpack.c.l.b16 %v178
    %v218 = vunpack.c.l.b16 %v179
    %v219 = vunpack.c.l.b16 %v180
    %v220 = vunpack.c.l.b16 %v181
    %v221 = vunpack.c.l.b16 %v182
    %v222 = vunpack.c.l.b16 %v183
    %v223 = vunpack.c.l.b16 %v184
    %v224 = vunpack.c.l.b16 %v185
    %v225 = vunpack.c.l.b16 %v186
    %v226 = vunpack.c.l.b16 %v187
    %v227 = vunpack.c.l.b16 %v188
    %v228 = vunpack.c.l.b16 %v189
    %v229 = vpack.c.b16 %v214, %v213
    %v230 = vpack.c.b16 %v216, %v215
    %v231 = vpack.c.b16 %v218, %v217
    %v232 = vpack.c.b16 %v220, %v219
    %v233 = vpack.c.b16 %v222, %v221
    %v234 = vpack.c.b16 %v224, %v223
    %v235 = vpack.c.b16 %v226, %v225
    %v236 = vpack.c.b16 %v228, %v227
    %245 = vmatprep.subr.bf16.mxu0 0
    %246 = vmatpush1.bf16.msra.mxu0 %v229
    %247 = vmatprep.subr.bf16.mxu0 0
    %248 = vmatpush1.bf16.msra.mxu0 %v230
    %249 = vmatprep.subr.bf16.mxu0 0
    %250 = vmatpush1.bf16.msra.mxu0 %v231
    %251 = vmatprep.subr.bf16.mxu0 0
    %252 = vmatpush1.bf16.msra.mxu0 %v232
    %253 = vmatprep.subr.bf16.mxu0 0
    %254 = vmatpush1.bf16.msra.mxu0 %v233
    %255 = vmatprep.subr.bf16.mxu0 0
    %256 = vmatpush1.bf16.msra.mxu0 %v234
    %257 = vmatprep.subr.bf16.mxu0 0
    %258 = vmatpush1.bf16.msra.mxu0 %v235
    %259 = vmatprep.subr.bf16.mxu0 0
    %260 = vmatpush1.bf16.msra.mxu0 %v236
    %261 = vmatprep.subr.bf16.mxu0 0
    %262 = vmatpush1.bf16.msra.mxu0 0
    %263 = vmatprep.subr.bf16.mxu0 0
    %264 = vmatpush1.bf16.msra.mxu0 0
    %265 = vmatprep.subr.bf16.mxu0 0
    %266 = vmatpush1.bf16.msra.mxu0 0
    %267 = vmatprep.subr.bf16.mxu0 0
    %268 = vmatpush1.bf16.msra.mxu0 0
    %269 = vmatprep.subr.bf16.mxu0 0
    %270 = vmatpush1.bf16.msra.mxu0 0
    %271 = vmatprep.subr.bf16.mxu0 0
    %272 = vmatpush1.bf16.msra.mxu0 0
    %273 = vmatprep.subr.bf16.mxu0 0
    %274 = vmatpush1.bf16.msra.mxu0 0
    %275 = vmatprep.subr.bf16.mxu0 0
    %276 = vmatpush1.bf16.msra.mxu0 0
    %277 = vmatprep.mubr.bf16.mxu0 0
    %278 = vmatmul.mubr.bf16.gmra.mrb[0].mxu0 %v173
    %v279 = vpop.f32.mrb[0].mxu0
    %v280 = vadd.f32 %v195, %v279
    %v281 = vpop.f32.mrb[0].mxu0
    %v282 = vpop.f32.mrb[0].mxu0
    %v283 = vpop.f32.mrb[0].mxu0
    %284 = vdwg.mxu0
    %v285 = vtanh.pop %v280
    %v286 = vpack.c.bf16 %v285, %v285
    %v287 = vld [vmem:[#allocation8] sm:$0xf]
    %v288 = vld [vmem:[#allocation8 + $0x4] sm:$0xf]
    %v289 = vld [vmem:[#allocation8 + $0x8] sm:$0xf]
    %v290 = vld [vmem:[#allocation8 + $0xc] sm:$0xf]
    %v291 = vld [vmem:[#allocation8 + $0x10] sm:$0xf]
    %v292 = vld [vmem:[#allocation8 + $0x14] sm:$0xf]
    %v293 = vld [vmem:[#allocation8 + $0x18] sm:$0xf]
    %v294 = vld [vmem:[#allocation8 + $0x1c] sm:$0xf]
    %v295 = vld [vmem:[#allocation8 + $0x20] sm:$0xf]
    %v296 = vld [vmem:[#allocation8 + $0x24] sm:$0xf]
    %v297 = vld [vmem:[#allocation8 + $0x28] sm:$0xf]
    %v298 = vld [vmem:[#allocation8 + $0x2c] sm:$0xf]
    %v299 = vld [vmem:[#allocation8 + $0x30] sm:$0xf]
    %v300 = vld [vmem:[#allocation8 + $0x34] sm:$0xf]
    %v301 = vld [vmem:[#allocation8 + $0x38] sm:$0xf]
    %v302 = vld [vmem:[#allocation8 + $0x3c] sm:$0xf]
    %v303 = vld [vmem:[%s6] sm:$0x1]
    %v305 = vlaneseq
    %v306 = vshrl.u32 %v305, 7
    %v307 = vsub.s32 0, %v306
    %v308 = vrot.slane %v303, %v307
    %v326 = vunpack.c.l.b16 %v287
    %v327 = vunpack.c.l.b16 %v288
    %v328 = vunpack.c.l.b16 %v289
    %v329 = vunpack.c.l.b16 %v290
    %v330 = vunpack.c.l.b16 %v291
    %v331 = vunpack.c.l.b16 %v292
    %v332 = vunpack.c.l.b16 %v293
    %v333 = vunpack.c.l.b16 %v294
    %v334 = vunpack.c.l.b16 %v295
    %v335 = vunpack.c.l.b16 %v296
    %v336 = vunpack.c.l.b16 %v297
    %v337 = vunpack.c.l.b16 %v298
    %v338 = vunpack.c.l.b16 %v299
    %v339 = vunpack.c.l.b16 %v300
    %v340 = vunpack.c.l.b16 %v301
    %v341 = vunpack.c.l.b16 %v302
    %v342 = vpack.c.b16 %v327, %v326
    %v343 = vpack.c.b16 %v329, %v328
    %v344 = vpack.c.b16 %v331, %v330
    %v345 = vpack.c.b16 %v333, %v332
    %v346 = vpack.c.b16 %v335, %v334
    %v347 = vpack.c.b16 %v337, %v336
    %v348 = vpack.c.b16 %v339, %v338
    %v349 = vpack.c.b16 %v341, %v340
    %358 = vmatprep.subr.bf16.mxu0 0
    %359 = vmatpush1.bf16.msra.mxu0 %v342
    %360 = vmatprep.subr.bf16.mxu0 0
    %361 = vmatpush1.bf16.msra.mxu0 %v343
    %362 = vmatprep.subr.bf16.mxu0 0
    %363 = vmatpush1.bf16.msra.mxu0 %v344
    %364 = vmatprep.subr.bf16.mxu0 0
    %365 = vmatpush1.bf16.msra.mxu0 %v345
    %366 = vmatprep.subr.bf16.mxu0 0
    %367 = vmatpush1.bf16.msra.mxu0 %v346
    %368 = vmatprep.subr.bf16.mxu0 0
    %369 = vmatpush1.bf16.msra.mxu0 %v347
    %370 = vmatprep.subr.bf16.mxu0 0
    %371 = vmatpush1.bf16.msra.mxu0 %v348
    %372 = vmatprep.subr.bf16.mxu0 0
    %373 = vmatpush1.bf16.msra.mxu0 %v349
    %374 = vmatprep.subr.bf16.mxu0 0
    %375 = vmatpush1.bf16.msra.mxu0 0
    %376 = vmatprep.subr.bf16.mxu0 0
    %377 = vmatpush1.bf16.msra.mxu0 0
    %378 = vmatprep.subr.bf16.mxu0 0
    %379 = vmatpush1.bf16.msra.mxu0 0
    %380 = vmatprep.subr.bf16.mxu0 0
    %381 = vmatpush1.bf16.msra.mxu0 0
    %382 = vmatprep.subr.bf16.mxu0 0
    %383 = vmatpush1.bf16.msra.mxu0 0
    %384 = vmatprep.subr.bf16.mxu0 0
    %385 = vmatpush1.bf16.msra.mxu0 0
    %386 = vmatprep.subr.bf16.mxu0 0
    %387 = vmatpush1.bf16.msra.mxu0 0
    %388 = vmatprep.subr.bf16.mxu0 0
    %389 = vmatpush1.bf16.msra.mxu0 0
    %390 = vmatprep.mubr.bf16.mxu0 0
    %391 = vmatmul.mubr.bf16.gmra.mrb[0].mxu0 %v286
    %v392 = vpop.f32.mrb[0].mxu0
    %v393 = vadd.f32 %v308, %v392
    %v394 = vpop.f32.mrb[0].mxu0
    %v395 = vpop.f32.mrb[0].mxu0
    %v396 = vpop.f32.mrb[0].mxu0
    %397 = vdwg.mxu0
    %v398 = vtanh.pop %v393
    %v399 = vpack.c.bf16 %v398, %v398
    %v400 = vld [vmem:[#allocation10] sm:$0xff]
    %v401 = vld [vmem:[#allocation10 + $0x8] sm:$0xff]
    %v402 = vld [vmem:[#allocation10 + $0x10] sm:$0xff]
    %v403 = vld [vmem:[#allocation10 + $0x18] sm:$0xff]
    %v404 = vld [vmem:[#allocation10 + $0x20] sm:$0xff]
    %v405 = vld [vmem:[#allocation10 + $0x28] sm:$0xff]
    %v406 = vld [vmem:[#allocation10 + $0x30] sm:$0xff]
    %v407 = vld [vmem:[#allocation10 + $0x38] sm:$0xff]
    %v408 = vld [vmem:[#allocation10 + $0x40] sm:$0xff]
    %v409 = vld [vmem:[#allocation10 + $0x48] sm:$0xff]
    %v410 = vld [vmem:[#allocation10 + $0x50] sm:$0xff]
    %v411 = vld [vmem:[#allocation10 + $0x58] sm:$0xff]
    %v412 = vld [vmem:[#allocation10 + $0x60] sm:$0xff]
    %v413 = vld [vmem:[#allocation10 + $0x68] sm:$0xff]
    %v414 = vld [vmem:[#allocation10 + $0x70] sm:$0xff]
    %v415 = vld [vmem:[#allocation10 + $0x78] sm:$0xff]
    %v416 = vld [vmem:[%s8] sm:$0x3]
    %v418 = vlaneseq
    %v419 = vshrl.u32 %v418, 7
    %v420 = vsub.s32 0, %v419
    %v421 = vrot.slane %v416, %v420
    %v422 = vlaneseq
    %v423 = vshrl.u32 %v422, 7
    %v424 = vsub.s32 1, %v423
    %v425 = vrot.slane %v416, %v424
    %v444 = vunpack.c.l.b16 %v400
    %v445 = vunpack.c.h.b16 %v400
    %v446 = vunpack.c.l.b16 %v401
    %v447 = vunpack.c.h.b16 %v401
    %v448 = vunpack.c.l.b16 %v402
    %v449 = vunpack.c.h.b16 %v402
    %v450 = vunpack.c.l.b16 %v403
    %v451 = vunpack.c.h.b16 %v403
    %v452 = vunpack.c.l.b16 %v404
    %v453 = vunpack.c.h.b16 %v404
    %v454 = vunpack.c.l.b16 %v405
    %v455 = vunpack.c.h.b16 %v405
    %v456 = vunpack.c.l.b16 %v406
    %v457 = vunpack.c.h.b16 %v406
    %v458 = vunpack.c.l.b16 %v407
    %v459 = vunpack.c.h.b16 %v407
    %v460 = vunpack.c.l.b16 %v408
    %v461 = vunpack.c.h.b16 %v408
    %v462 = vunpack.c.l.b16 %v409
    %v463 = vunpack.c.h.b16 %v409
    %v464 = vunpack.c.l.b16 %v410
    %v465 = vunpack.c.h.b16 %v410
    %v466 = vunpack.c.l.b16 %v411
    %v467 = vunpack.c.h.b16 %v411
    %v468 = vunpack.c.l.b16 %v412
    %v469 = vunpack.c.h.b16 %v412
    %v470 = vunpack.c.l.b16 %v413
    %v471 = vunpack.c.h.b16 %v413
    %v472 = vunpack.c.l.b16 %v414
    %v473 = vunpack.c.h.b16 %v414
    %v474 = vunpack.c.l.b16 %v415
    %v475 = vunpack.c.h.b16 %v415
    %v476 = vpack.c.b16 %v446, %v444
    %v477 = vpack.c.b16 %v447, %v445
    %v478 = vpack.c.b16 %v450, %v448
    %v479 = vpack.c.b16 %v451, %v449
    %v480 = vpack.c.b16 %v454, %v452
    %v481 = vpack.c.b16 %v455, %v453
    %v482 = vpack.c.b16 %v458, %v456
    %v483 = vpack.c.b16 %v459, %v457
    %v484 = vpack.c.b16 %v462, %v460
    %v485 = vpack.c.b16 %v463, %v461
    %v486 = vpack.c.b16 %v466, %v464
    %v487 = vpack.c.b16 %v467, %v465
    %v488 = vpack.c.b16 %v470, %v468
    %v489 = vpack.c.b16 %v471, %v469
    %v490 = vpack.c.b16 %v474, %v472
    %v491 = vpack.c.b16 %v475, %v473
    %508 = vmatprep.subr.bf16.mxu0 %v477
    %509 = vmatpush1.bf16.msra.mxu0 %v476
    %510 = vmatprep.subr.bf16.mxu0 %v479
    %511 = vmatpush1.bf16.msra.mxu0 %v478
    %512 = vmatprep.subr.bf16.mxu0 %v481
    %513 = vmatpush1.bf16.msra.mxu0 %v480
    %514 = vmatprep.subr.bf16.mxu0 %v483
    %515 = vmatpush1.bf16.msra.mxu0 %v482
    %516 = vmatprep.subr.bf16.mxu0 %v485
    %517 = vmatpush1.bf16.msra.mxu0 %v484
    %518 = vmatprep.subr.bf16.mxu0 %v487
    %519 = vmatpush1.bf16.msra.mxu0 %v486
    %520 = vmatprep.subr.bf16.mxu0 %v489
    %521 = vmatpush1.bf16.msra.mxu0 %v488
    %522 = vmatprep.subr.bf16.mxu0 %v491
    %523 = vmatpush1.bf16.msra.mxu0 %v490
    %524 = vmatprep.subr.bf16.mxu0 0
    %525 = vmatpush1.bf16.msra.mxu0 0
    %526 = vmatprep.subr.bf16.mxu0 0
    %527 = vmatpush1.bf16.msra.mxu0 0
    %528 = vmatprep.subr.bf16.mxu0 0
    %529 = vmatpush1.bf16.msra.mxu0 0
    %530 = vmatprep.subr.bf16.mxu0 0
    %531 = vmatpush1.bf16.msra.mxu0 0
    %532 = vmatprep.subr.bf16.mxu0 0
    %533 = vmatpush1.bf16.msra.mxu0 0
    %534 = vmatprep.subr.bf16.mxu0 0
    %535 = vmatpush1.bf16.msra.mxu0 0
    %536 = vmatprep.subr.bf16.mxu0 0
    %537 = vmatpush1.bf16.msra.mxu0 0
    %538 = vmatprep.subr.bf16.mxu0 0
    %539 = vmatpush1.bf16.msra.mxu0 0
    %540 = vmatprep.mubr.bf16.mxu0 0
    %541 = vmatmul.mubr.bf16.gmra.mrb[0].mxu0 %v399
    %v542 = vpop.f32.mrb[0].mxu0
    %v543 = vadd.f32 %v421, %v542
    %v544 = vpop.f32.mrb[0].mxu0
    %v545 = vadd.f32 %v425, %v544
    %v546 = vpop.f32.mrb[0].mxu0
    %v547 = vpop.f32.mrb[0].mxu0
    %548 = vdwg.mxu0
    %vm549 = vcmask 64512
    %550 = vst.msk [vmem:[#allocation11] sm:$0xff] %vm549, %v543
    %551 = vst.msk [vmem:[#allocation12] sm:$0xff] %vm549, %v545
    // Predicated region
    $region58: #{encoder_forward.1} parent=1 // pred_check
      _
    $region59: #{encoder_forward.1} parent=1 // pred_check_branch
      %553 = sbr.rel (0) target = $region61
    $region60: #{encoder_forward.1} parent=1 // pred_region
      %s555 = ssub.s32 128, 128
      %556 = vsyncadd [#allocation4], %s555
      %s558 = sshll.u32 [#allocation11], 4
      %s559 = int_to_ptr.vmem [resolvable:$true] %s558
      %561 = dma.vmem_to_hbm [thread:$0]  %s559, 128, %s9, [#allocation4]
    $region61: #{encoder_forward.1} parent=1 // pred_fallthru
      _
    // Predicated region
    $region62: #{encoder_forward.1} parent=1 // pred_check
      _
    $region63: #{encoder_forward.1} parent=1 // pred_check_branch
      %563 = sbr.rel (0) target = $region65
    $region64: #{encoder_forward.1} parent=1 // pred_region
      %s565 = ssub.s32 128, 128
      %566 = vsyncadd [#allocation13], %s565
      %s568 = sshll.u32 [#allocation12], 4
      %s569 = int_to_ptr.vmem [resolvable:$true] %s568
      %571 = dma.vmem_to_hbm [thread:$0]  %s569, 128, %s10, [#allocation13]
    $region65: #{encoder_forward.1} parent=1 // pred_fallthru
      _
    // Predicated region
    $region66: #{encoder_forward.1} parent=1 // pred_check
      _
    $region67: #{encoder_forward.1} parent=1 // pred_check_branch
      %573 = sbr.rel (0) target = $region69
    $region68: #{encoder_forward.1} parent=1 // pred_region
      %574 = dma.done [#allocation4], 128
    $region69: #{encoder_forward.1} parent=1 // pred_fallthru
      _
    // Predicated region
    $region70: #{encoder_forward.1} parent=1 // pred_check
      _
    $region71: #{encoder_forward.1} parent=1 // pred_check_branch
      %576 = sbr.rel (0) target = $region73
    $region72: #{encoder_forward.1} parent=1 // pred_region
      %577 = dma.done [#allocation13], 128
    $region73: #{encoder_forward.1} parent=1 // pred_fallthru
      _
    %578 = vsyncpa [#allocation3], 1
    %579 = vsyncpa [#allocation6], 1
    %580 = vsyncpa [#allocation9], 1
    %581 = vsyncpa [#allocation4], 1
    %582 = vsyncpa [#allocation13], 1

</llo_original>
